<compile_context>
chip_gen: v5e
topology: v5e:2x2
jax: 0.10.0
libtpu: 0.0.40
codegen_flags: <defaults>
</compile_context>

<pallas_src>
import functools

import jax
import jax.numpy as jnp
from jax.experimental import pallas as pl
from jax.experimental.pallas import tpu as pltpu
from jax.scipy.stats import norm

LANES = 128


def _round_up(x, m):
    return (x + m - 1) // m * m


def _lane_pad(c):
    """Pad a channel count to a multiple of 128 only when it is already >= 128."""
    return c if c < LANES else _round_up(c, LANES)


def _vmem_limit_bytes():
    """Generation-aware VMEM limit: ~24 MiB headroom under physical VMEM
    (64 MiB on v7x -> ~40 MiB, 128 MiB on v5e/v6e -> capped at 100 MiB)."""
    try:
        cap = pltpu.get_tpu_info().vmem_capacity_bytes
    except Exception:
        cap = 64 * 1024 * 1024
    return int(max(32 * 1024 * 1024, min(cap - 24 * 1024 * 1024, 100 * 1024 * 1024)))


def _pick_group(B, L_pad, per_row_bytes, act_budget_bytes):
    """Largest divisor G of B whose activation working set (G*L_pad rows) fits the
    activation VMEM budget.  No forced splitting: a single big tile beats many small
    ones for this mem-bound kernel (per-step overhead ~0.35us, bigger DMAs)."""
    cap_rows = max(L_pad, act_budget_bytes // max(per_row_bytes, 1))
    cap = max(1, cap_rows // L_pad)
    g = 1
    for cand in range(1, min(cap, B) + 1):
        if B % cand == 0:
            g = cand
    return g


# ----------------------------------------------------------------------------
# Fused Pallas kernel: gating pool+matmul and the full expert ResBlock
# ----------------------------------------------------------------------------
def _expert_kernel(x_ref, wgn_ref, w1_ref, b1_ref, w2_ref, b2_ref, w3_ref, b3_ref,
                   wt_ref, bt_ref, o_ref, gate_ref, *, L_real):
    """x_ref: [G, L_pad, Cin] bf16 block (G whole batch elements, L zero-padded to %8).

    Emits:
      o_ref    [G, L_pad, Cout] bf16 = ReLU(conv1x1(ReLU(conv3(ReLU(conv1x1(x))))) + x_transform(x))
      gate_ref [1, G, 128]      f32  = mean_{L_real}(x) @ (w_gate | w_noise | 0-pad)
    """
    G, L_pad, Cin = x_ref.shape
    rows = G * L_pad
    x = x_ref[...]                                            # bf16 [G, L_pad, Cin]

    # ---- fused gating: f32 row-sum over L (padded rows are zero) * 1/L_real ----
    gate_x = (jnp.sum(x, axis=1, dtype=jnp.float32) * (1.0 / L_real)).astype(jnp.bfloat16)
    gate_ref[0] = jnp.dot(gate_x, wgn_ref[...],
                          preferred_element_type=jnp.float32)  # f32 [G, 128]

    # ---- expert ResBlock, rows = flattened (batch, length) ----
    xr = x.reshape(rows, Cin)                                  # bf16 [rows, Cin]

    # conv1x1 (Cin -> Cb) + ReLU   (bf16 operands, f32 accumulate, f32 bias)
    h1 = jnp.dot(xr, w1_ref[...], preferred_element_type=jnp.float32) + b1_ref[...]
    h1 = jnp.maximum(h1, 0.0)                                  # f32 [rows, Cb]

    # conv k=3, padding=1: three accumulating dots on sublane-rolled taps.
    # Wrapped rows (batch boundaries) are exactly l==0 / l>=L_real-1 and are masked to
    # zero (== zero padding).  Rolls run in f32 on the XLU; MXU operands are bf16.
    l_idx = jax.lax.broadcasted_iota(jnp.int32, (rows, 1), 0) % L_pad
    prev = jnp.where(l_idx == 0, 0.0,
                     pltpu.roll(h1, shift=1, axis=0)).astype(jnp.bfloat16)
    nxt = jnp.where(l_idx >= L_real - 1, 0.0,
                    pltpu.roll(h1, shift=rows - 1, axis=0)).astype(jnp.bfloat16)
    h1b = h1.astype(jnp.bfloat16)
    h2 = (jnp.dot(prev, w2_ref[0], preferred_element_type=jnp.float32)
          + jnp.dot(h1b, w2_ref[1], preferred_element_type=jnp.float32)
          + jnp.dot(nxt, w2_ref[2], preferred_element_type=jnp.float32)
          + b2_ref[...])
    h2 = jnp.maximum(h2, 0.0).astype(jnp.bfloat16)             # [rows, Cb]

    # conv1x1 (Cb -> Cout)
    h3 = jnp.dot(h2, w3_ref[...], preferred_element_type=jnp.float32) + b3_ref[...]

    # residual branch (x_transform: conv1x1 or identity-as-eye) + add + ReLU, bf16 store
    xt = jnp.dot(xr, wt_ref[...], preferred_element_type=jnp.float32) + bt_ref[...]
    o_ref[...] = jnp.maximum(h3 + xt, 0.0).astype(o_ref.dtype).reshape(o_ref.shape)


def _expert_forward_pallas(x_p, params, G, L_real, vmem_limit):
    """x_p: [B, L_pad, Cin] bf16 (channels-last; channels unpadded when < 128)."""
    B, L_pad, C_in = x_p.shape
    Cb = params['w1'].shape[1]
    C_out = params['w3'].shape[1]
    E2_p = params['w_gate_noise'].shape[1]
    n_g = B // G

    kernel = functools.partial(_expert_kernel, L_real=L_real)
    out_p, gate_logits = pl.pallas_call(
        kernel,
        out_shape=(jax.ShapeDtypeStruct((B, L_pad, C_out), jnp.bfloat16),
                   jax.ShapeDtypeStruct((n_g, G, E2_p), jnp.float32)),
        grid=(n_g,),
        in_specs=[
            pl.BlockSpec((G, L_pad, C_in), lambda g: (g, 0, 0)),
            pl.BlockSpec((C_in, E2_p), lambda g: (0, 0)),
            pl.BlockSpec((C_in, Cb), lambda g: (0, 0)),
            pl.BlockSpec((1, Cb), lambda g: (0, 0)),
            pl.BlockSpec((3, Cb, Cb), lambda g: (0, 0, 0)),
            pl.BlockSpec((1, Cb), lambda g: (0, 0)),
            pl.BlockSpec((Cb, C_out), lambda g: (0, 0)),
            pl.BlockSpec((1, C_out), lambda g: (0, 0)),
            pl.BlockSpec((C_in, C_out), lambda g: (0, 0)),
            pl.BlockSpec((1, C_out), lambda g: (0, 0)),
        ],
        out_specs=(pl.BlockSpec((G, L_pad, C_out), lambda g: (g, 0, 0)),
                   pl.BlockSpec((1, G, E2_p), lambda g: (g, 0, 0))),
        compiler_params=pltpu.CompilerParams(
            dimension_semantics=("parallel",),
            vmem_limit_bytes=vmem_limit),
    )(x_p, params['w_gate_noise'], params['w1'], params['b1'], params['w2'],
      params['b2'], params['w3'], params['b3'], params['wt'], params['bt'])

    return out_p, gate_logits.reshape(B, E2_p)


# ----------------------------------------------------------------------------
# JAX glue reproducing the MoE noisy-top-k gating / load-balancing loss
# ----------------------------------------------------------------------------
def _cv_squared(v):
    eps = 1e-10
    if v.shape[0] == 1:
        return jnp.zeros((), jnp.float32)
    return jnp.var(v, ddof=1) / (jnp.mean(v) ** 2 + eps)   # torch.var is unbiased


def _prob_in_top_k(clean, noisy, noise_std, top_logits, k):
    thr_in = top_logits[:, k:k + 1]          # threshold_positions_if_in
    thr_out = top_logits[:, k - 1:k]         # threshold_positions_if_out
    is_in = noisy > thr_in
    prob_if_in = norm.cdf((clean - thr_in) / noise_std)
    prob_if_out = norm.cdf((clean - thr_out) / noise_std)
    return jnp.where(is_in, prob_if_in, prob_if_out)


def moe_resblock_forward(x_ncl, params, *, num_experts, top_k, temperature=1.0,
                         noisy_gating=True, train=True, loss_coef=0.01,
                         noise_key=None, noise_epsilon=0.01):
    B, C_in, L = x_ncl.shape
    C_out = params['meta']['C_out']
    C_in_p = params['w1'].shape[0]
    C_out_p = params['w3'].shape[1]
    Cb_p = params['w1'].shape[1]
    L_pad = _round_up(L, 8)

    # Layout change + sublane/channel padding + bf16 cast (done once on the way in).
    x_blc = jnp.transpose(x_ncl, (0, 2, 1)).astype(jnp.bfloat16)
    x_blc = jnp.pad(x_blc, ((0, 0), (0, L_pad - L), (0, C_in_p - C_in)))

    # Tile size from the VMEM budget (not a fixed row target).
    vmem_limit = _vmem_limit_bytes()
    per_row_bytes = 4 * C_in_p + 12 * Cb_p + 12 * C_out_p   # double-buffered IO + temps
    G = _pick_group(B, L_pad, per_row_bytes, act_budget_bytes=vmem_limit // 2)

    # ---- single fused Pallas call: gating logits + expert ResBlock output ----
    out_p, gate_logits = _expert_forward_pallas(x_blc, params, G, L, vmem_limit)
    clean_logits = gate_logits[:, :num_experts]
    raw_noise = gate_logits[:, num_experts:2 * num_experts]

    # ---- noisy top-k gating (tiny, plain-JAX glue, as in torch) ----
    use_noise = noisy_gating and train
    if use_noise:
        if noise_key is None:
            raise ValueError("noise_key is required when noisy_gating and train")
        noise_std = jax.nn.softplus(raw_noise) + noise_epsilon
        noisy_logits = clean_logits + jax.random.normal(noise_key, clean_logits.shape) * noise_std
        logits = noisy_logits
    else:
        noise_std = None
        noisy_logits = clean_logits
        logits = clean_logits
    logits = jax.nn.softmax(logits / temperature, axis=1)
    m = min(top_k + 1, num_experts)
    top_logits, top_indices = jax.lax.top_k(logits, m)
    top_k_logits = top_logits[:, :top_k]
    top_k_indices = top_indices[:, :top_k]
    top_k_gates = jax.nn.softmax(top_k_logits, axis=1)
    gates = jnp.zeros_like(logits).at[jnp.arange(B)[:, None], top_k_indices].set(top_k_gates)

    if use_noise and top_k < num_experts:
        load = _prob_in_top_k(clean_logits, noisy_logits, noise_std, top_logits, top_k).sum(0)
    else:
        load = (gates > 0).astype(jnp.float32).sum(0)
    importance = gates.sum(0)
    moe_loss = (_cv_squared(importance) + _cv_squared(load)) * loss_coef

    # Identical expert weights + gates summing to 1 => dispatch/combine == ResBlock(x),
    # which is exactly what the fused kernel computed.
    out_blc = out_p[:, :L, :C_out]
    out_ncl = jnp.transpose(out_blc, (0, 2, 1)).astype(jnp.float32)   # back to [B, C_out, L]
    return out_ncl, moe_loss


# ----------------------------------------------------------------------------
# Deterministic parameter init (shapes from the module's __init__), bf16 MXU weights
# ----------------------------------------------------------------------------
def init_params(key, C_in, C_out, Cb, num_experts):
    ks = jax.random.split(key, 8)
    C_in_p, Cb_p, C_out_p = _lane_pad(C_in), _lane_pad(Cb), _lane_pad(C_out)
    E2_p = max(LANES, _round_up(2 * num_experts, LANES))   # lane-dense gate output

    def w(k, shape, fan_in):
        return jax.random.normal(k, shape, jnp.float32) / jnp.sqrt(float(fan_in))

    def pad2(a, r, c):
        return jnp.pad(a, ((0, r - a.shape[0]), (0, c - a.shape[1])))

    w1 = pad2(w(ks[0], (C_in, Cb), C_in), C_in_p, Cb_p)
    b1 = jnp.pad(w(ks[1], (1, Cb), C_in), ((0, 0), (0, Cb_p - Cb)))
    # conv k=3 weights stacked as (tap, Cb, Cb), tap order (prev, center, next), i.e.
    # torch Conv1d weight[:, :, k].T for k = 0, 1, 2.
    w2 = w(ks[2], (3, Cb, Cb), 3 * Cb)
    w2 = jnp.stack([pad2(w2[t], Cb_p, Cb_p) for t in range(3)], axis=0)
    b2 = jnp.pad(w(ks[3], (1, Cb), 3 * Cb), ((0, 0), (0, Cb_p - Cb)))
    w3 = pad2(w(ks[4], (Cb, C_out), Cb), Cb_p, C_out_p)
    b3 = jnp.pad(w(ks[5], (1, C_out), Cb), ((0, 0), (0, C_out_p - C_out)))
    if C_out != C_in:   # x_transform = Conv1d(C_in, C_out, kernel_size=1)
        wt = pad2(w(ks[6], (C_in, C_out), C_in), C_in_p, C_out_p)
        bt = jnp.pad(w(ks[7], (1, C_out), C_in), ((0, 0), (0, C_out_p - C_out)))
    else:               # x_transform = Identity, expressed as a bf16 eye matmul
        wt = pad2(jnp.eye(C_in, dtype=jnp.float32), C_in_p, C_out_p)
        bt = jnp.zeros((1, C_out_p), jnp.float32)

    return {
        # torch init: zeros.  Stored concatenated (w_gate | w_noise | 0-pad to 128) so
        # the fused gating matmul is one lane-dense bf16 dot sharing the pooled LHS.
        'w_gate_noise': jnp.zeros((C_in_p, E2_p), jnp.bfloat16),
        'w1': w1.astype(jnp.bfloat16), 'b1': b1,
        'w2': w2.astype(jnp.bfloat16), 'b2': b2,
        'w3': w3.astype(jnp.bfloat16), 'b3': b3,
        'wt': wt.astype(jnp.bfloat16), 'bt': bt,
        'meta': {'C_in': C_in, 'C_out': C_out, 'Cb': Cb, 'E': num_experts},
    }


if __name__ == "__main__":
    B, C_in, C_out, Cb, L = 2, 8, 16, 8, 16
    NUM_EXPERTS, TOP_K = 4, 2

    key = jax.random.PRNGKey(0)
    kx, kp, kn = jax.random.split(key, 3)
    x = jax.random.normal(kx, (B, C_in, L), jnp.float32)          # NCL, like PyTorch
    params = init_params(kp, C_in, C_out, Cb, NUM_EXPERTS)

    fwd = functools.partial(moe_resblock_forward, num_experts=NUM_EXPERTS,
                            top_k=TOP_K, temperature=1.0, train=True,
                            loss_coef=0.01, noise_key=kn)
    out, moe_loss = fwd(x, params)
    jax.block_until_ready((out, moe_loss))
    assert out.shape == (B, C_out, L)
    assert moe_loss.shape == ()
    print("KERNEL_OK")
</pallas_src>

<mosaic_0001>
module attributes {stable_mosaic.version = 11 : i64} {
  func.func @_expert_kernel(%arg0: i32, %arg1: memref<2x16x8xbf16, #tpu.memory_space<vmem>>, %arg2: memref<8x128xbf16, #tpu.memory_space<vmem>>, %arg3: memref<8x8xbf16, #tpu.memory_space<vmem>>, %arg4: memref<1x8xf32, #tpu.memory_space<vmem>>, %arg5: memref<3x8x8xbf16, #tpu.memory_space<vmem>>, %arg6: memref<1x8xf32, #tpu.memory_space<vmem>>, %arg7: memref<8x16xbf16, #tpu.memory_space<vmem>>, %arg8: memref<1x16xf32, #tpu.memory_space<vmem>>, %arg9: memref<8x16xbf16, #tpu.memory_space<vmem>>, %arg10: memref<1x16xf32, #tpu.memory_space<vmem>>, %arg11: memref<2x16x16xbf16, #tpu.memory_space<vmem>>, %arg12: memref<1x2x128xf32, #tpu.memory_space<vmem>>) attributes {dimension_semantics = [#tpu.dimension_semantics<parallel>], iteration_bounds = array<i64: 1>, scalar_prefetch = 0 : i64, scratch_operands = 0 : i64, tpu.core_type = #tpu.core_type<tc>, window_params = [{transform_indices = @transform_0, window_bounds = array<i64: 2, 16, 8>}, {pipeline_mode = #tpu.pipeline_mode<synchronous>, transform_indices = @transform_1, window_bounds = array<i64: 8, 128>}, {pipeline_mode = #tpu.pipeline_mode<synchronous>, transform_indices = @transform_2, window_bounds = array<i64: 8, 8>}, {pipeline_mode = #tpu.pipeline_mode<synchronous>, transform_indices = @transform_3, window_bounds = array<i64: 1, 8>}, {pipeline_mode = #tpu.pipeline_mode<synchronous>, transform_indices = @transform_4, window_bounds = array<i64: 3, 8, 8>}, {pipeline_mode = #tpu.pipeline_mode<synchronous>, transform_indices = @transform_5, window_bounds = array<i64: 1, 8>}, {pipeline_mode = #tpu.pipeline_mode<synchronous>, transform_indices = @transform_6, window_bounds = array<i64: 8, 16>}, {pipeline_mode = #tpu.pipeline_mode<synchronous>, transform_indices = @transform_7, window_bounds = array<i64: 1, 16>}, {pipeline_mode = #tpu.pipeline_mode<synchronous>, transform_indices = @transform_8, window_bounds = array<i64: 8, 16>}, {pipeline_mode = #tpu.pipeline_mode<synchronous>, transform_indices = @transform_9, window_bounds = array<i64: 1, 16>}, {transform_indices = @transform_10, window_bounds = array<i64: 2, 16, 16>}, {transform_indices = @transform_11, window_bounds = array<i64: 1, 2, 128>}]} {
    %c0 = arith.constant 0 : index
    %c0_0 = arith.constant 0 : index
    %c0_1 = arith.constant 0 : index
    %0 = vector.load %arg1[%c0, %c0_0, %c0_1] : memref<2x16x8xbf16, #tpu.memory_space<vmem>>, vector<2x16x8xbf16>
    %1 = arith.extf %0 : vector<2x16x8xbf16> to vector<2x16x8xf32>
    %cst = arith.constant dense<0.000000e+00> : vector<2x8xf32>
    %2 = vector.multi_reduction <add>, %1, %cst [1] : vector<2x16x8xf32> to vector<2x8xf32>
    %cst_2 = arith.constant 6.250000e-02 : f32
    %3 = vector.broadcast %cst_2 : f32 to vector<2x8xf32>
    %4 = arith.mulf %2, %3 : vector<2x8xf32>
    %5 = arith.truncf %4 : vector<2x8xf32> to vector<2x8xbf16>
    %c0_3 = arith.constant 0 : index
    %c0_4 = arith.constant 0 : index
    %6 = vector.load %arg2[%c0_3, %c0_4] : memref<8x128xbf16, #tpu.memory_space<vmem>>, vector<8x128xbf16>
    %cst_5 = arith.constant dense<0.000000e+00> : vector<2x128xf32>
    %7 = tpu.matmul %5, %6, %cst_5 {dimension_numbers = #tpu.dot_dimension_numbers<[1], [0], [0], [1], [0, 0, 1, 1], [], []>} : vector<2x8xbf16>, vector<8x128xbf16>, vector<2x128xf32> -> vector<2x128xf32>
    %c0_6 = arith.constant 0 : index
    %c0_7 = arith.constant 0 : index
    %c0_8 = arith.constant 0 : index
    %8 = vector.load %arg12[%c0_6, %c0_7, %c0_8] : memref<1x2x128xf32, #tpu.memory_space<vmem>>, vector<1x2x128xf32>
    %9 = vector.shape_cast %8 : vector<1x2x128xf32> to vector<2x128xf32>
    %10 = vector.shape_cast %7 : vector<2x128xf32> to vector<1x2x128xf32>
    tpu.vector_store %arg12[%c0_6, %c0_7, %c0_8], %10 {strides = array<i32>} : memref<1x2x128xf32, #tpu.memory_space<vmem>>, vector<1x2x128xf32>,
    %11 = vector.shape_cast %0 : vector<2x16x8xbf16> to vector<32x8xbf16>
    %c0_9 = arith.constant 0 : index
    %c0_10 = arith.constant 0 : index
    %12 = vector.load %arg3[%c0_9, %c0_10] : memref<8x8xbf16, #tpu.memory_space<vmem>>, vector<8x8xbf16>
    %cst_11 = arith.constant dense<0.000000e+00> : vector<32x8xf32>
    %13 = tpu.matmul %11, %12, %cst_11 {dimension_numbers = #tpu.dot_dimension_numbers<[1], [0], [0], [1], [0, 0, 1, 1], [], []>} : vector<32x8xbf16>, vector<8x8xbf16>, vector<32x8xf32> -> vector<32x8xf32>
    %c0_12 = arith.constant 0 : index
    %c0_13 = arith.constant 0 : index
    %14 = vector.load %arg4[%c0_12, %c0_13] : memref<1x8xf32, #tpu.memory_space<vmem>>, vector<1x8xf32>
    %15 = vector.broadcast %14 : vector<1x8xf32> to vector<32x8xf32>
    %16 = arith.addf %13, %15 : vector<32x8xf32>
    %cst_14 = arith.constant 0.000000e+00 : f32
    %17 = vector.broadcast %cst_14 : f32 to vector<32x8xf32>
    %18 = arith.maximumf %16, %17 : vector<32x8xf32>
    %19 = tpu.iota {dimensions = array<i32: 0>} : vector<32x1xi32>
    %c16_i32 = arith.constant 16 : i32
    %c0_i32 = arith.constant 0 : i32
    %20 = arith.cmpi eq, %c16_i32, %c0_i32 : i32
    %c1_i32 = arith.constant 1 : i32
    %21 = arith.select %20, %c1_i32, %c16_i32 : i32
    %22 = vector.broadcast %21 : i32 to vector<32x1xi32>
    %23 = arith.remsi %19, %22 : vector<32x1xi32>
    %c0_i32_15 = arith.constant 0 : i32
    %24 = vector.broadcast %c0_i32_15 : i32 to vector<32x1xi32>
    %25 = arith.cmpi ne, %23, %24 : vector<32x1xi32>
    %c0_i32_16 = arith.constant 0 : i32
    %26 = vector.broadcast %c0_i32_16 : i32 to vector<32x1xi32>
    %27 = arith.cmpi slt, %23, %26 : vector<32x1xi32>
    %c0_i32_17 = arith.constant 0 : i32
    %28 = arith.cmpi slt, %21, %c0_i32_17 : i32
    %29 = vector.broadcast %28 : i1 to vector<32x1xi1>
    %30 = vector.broadcast %29 : vector<32x1xi1> to vector<32x1xi1>
    %31 = arith.xori %27, %30 : vector<32x1xi1>
    %32 = arith.andi %31, %25 : vector<32x1xi1>
    %33 = vector.broadcast %21 : i32 to vector<32x1xi32>
    %34 = arith.addi %23, %33 : vector<32x1xi32>
    %35 = arith.select %32, %34, %23 : vector<32x1xi1>, vector<32x1xi32>
    %c0_i32_18 = arith.constant 0 : i32
    %36 = vector.broadcast %c0_i32_18 : i32 to vector<32x1xi32>
    %37 = arith.cmpi eq, %35, %36 : vector<32x1xi32>
    %c1_i32_19 = arith.constant 1 : i32
    %38 = tpu.dynamic_rotate %18 by %c1_i32_19 dim 0 : vector<32x8xf32>, i32 -> vector<32x8xf32>
    %cst_20 = arith.constant 0.000000e+00 : f32
    %39 = vector.shape_cast %37 : vector<32x1xi1> to vector<32x1xi1>
    %40 = vector.broadcast %39 : vector<32x1xi1> to vector<32x8xi1>
    %41 = vector.broadcast %cst_20 : f32 to vector<32x8xf32>
    %42 = arith.select %40, %41, %38 : vector<32x8xi1>, vector<32x8xf32>
    %43 = arith.truncf %42 : vector<32x8xf32> to vector<32x8xbf16>
    %c15_i32 = arith.constant 15 : i32
    %44 = vector.broadcast %c15_i32 : i32 to vector<32x1xi32>
    %45 = arith.cmpi sge, %35, %44 : vector<32x1xi32>
    %c31_i32 = arith.constant 31 : i32
    %46 = tpu.dynamic_rotate %18 by %c31_i32 dim 0 : vector<32x8xf32>, i32 -> vector<32x8xf32>
    %cst_21 = arith.constant 0.000000e+00 : f32
    %47 = vector.shape_cast %45 : vector<32x1xi1> to vector<32x1xi1>
    %48 = vector.broadcast %47 : vector<32x1xi1> to vector<32x8xi1>
    %49 = vector.broadcast %cst_21 : f32 to vector<32x8xf32>
    %50 = arith.select %48, %49, %46 : vector<32x8xi1>, vector<32x8xf32>
    %51 = arith.truncf %50 : vector<32x8xf32> to vector<32x8xbf16>
    %52 = arith.truncf %18 : vector<32x8xf32> to vector<32x8xbf16>
    %c0_22 = arith.constant 0 : index
    %c0_23 = arith.constant 0 : index
    %c0_24 = arith.constant 0 : index
    %53 = vector.load %arg5[%c0_22, %c0_23, %c0_24] : memref<3x8x8xbf16, #tpu.memory_space<vmem>>, vector<1x8x8xbf16>
    %54 = vector.shape_cast %53 : vector<1x8x8xbf16> to vector<8x8xbf16>
    %cst_25 = arith.constant dense<0.000000e+00> : vector<32x8xf32>
    %55 = tpu.matmul %43, %54, %cst_25 {dimension_numbers = #tpu.dot_dimension_numbers<[1], [0], [0], [1], [0, 0, 1, 1], [], []>} : vector<32x8xbf16>, vector<8x8xbf16>, vector<32x8xf32> -> vector<32x8xf32>
    %c1 = arith.constant 1 : index
    %c0_26 = arith.constant 0 : index
    %c0_27 = arith.constant 0 : index
    %56 = vector.load %arg5[%c1, %c0_26, %c0_27] : memref<3x8x8xbf16, #tpu.memory_space<vmem>>, vector<1x8x8xbf16>
    %57 = vector.shape_cast %56 : vector<1x8x8xbf16> to vector<8x8xbf16>
    %cst_28 = arith.constant dense<0.000000e+00> : vector<32x8xf32>
    %58 = tpu.matmul %52, %57, %cst_28 {dimension_numbers = #tpu.dot_dimension_numbers<[1], [0], [0], [1], [0, 0, 1, 1], [], []>} : vector<32x8xbf16>, vector<8x8xbf16>, vector<32x8xf32> -> vector<32x8xf32>
    %59 = arith.addf %55, %58 : vector<32x8xf32>
    %c2 = arith.constant 2 : index
    %c0_29 = arith.constant 0 : index
    %c0_30 = arith.constant 0 : index
    %60 = vector.load %arg5[%c2, %c0_29, %c0_30] : memref<3x8x8xbf16, #tpu.memory_space<vmem>>, vector<1x8x8xbf16>
    %61 = vector.shape_cast %60 : vector<1x8x8xbf16> to vector<8x8xbf16>
    %cst_31 = arith.constant dense<0.000000e+00> : vector<32x8xf32>
    %62 = tpu.matmul %51, %61, %cst_31 {dimension_numbers = #tpu.dot_dimension_numbers<[1], [0], [0], [1], [0, 0, 1, 1], [], []>} : vector<32x8xbf16>, vector<8x8xbf16>, vector<32x8xf32> -> vector<32x8xf32>
    %63 = arith.addf %59, %62 : vector<32x8xf32>
    %c0_32 = arith.constant 0 : index
    %c0_33 = arith.constant 0 : index
    %64 = vector.load %arg6[%c0_32, %c0_33] : memref<1x8xf32, #tpu.memory_space<vmem>>, vector<1x8xf32>
    %65 = vector.broadcast %64 : vector<1x8xf32> to vector<32x8xf32>
    %66 = arith.addf %63, %65 : vector<32x8xf32>
    %cst_34 = arith.constant 0.000000e+00 : f32
    %67 = vector.broadcast %cst_34 : f32 to vector<32x8xf32>
    %68 = arith.maximumf %66, %67 : vector<32x8xf32>
    %69 = arith.truncf %68 : vector<32x8xf32> to vector<32x8xbf16>
    %c0_35 = arith.constant 0 : index
    %c0_36 = arith.constant 0 : index
    %70 = vector.load %arg7[%c0_35, %c0_36] : memref<8x16xbf16, #tpu.memory_space<vmem>>, vector<8x16xbf16>
    %cst_37 = arith.constant dense<0.000000e+00> : vector<32x16xf32>
    %71 = tpu.matmul %69, %70, %cst_37 {dimension_numbers = #tpu.dot_dimension_numbers<[1], [0], [0], [1], [0, 0, 1, 1], [], []>} : vector<32x8xbf16>, vector<8x16xbf16>, vector<32x16xf32> -> vector<32x16xf32>
    %c0_38 = arith.constant 0 : index
    %c0_39 = arith.constant 0 : index
    %72 = vector.load %arg8[%c0_38, %c0_39] : memref<1x16xf32, #tpu.memory_space<vmem>>, vector<1x16xf32>
    %73 = vector.broadcast %72 : vector<1x16xf32> to vector<32x16xf32>
    %74 = arith.addf %71, %73 : vector<32x16xf32>
    %c0_40 = arith.constant 0 : index
    %c0_41 = arith.constant 0 : index
    %75 = vector.load %arg9[%c0_40, %c0_41] : memref<8x16xbf16, #tpu.memory_space<vmem>>, vector<8x16xbf16>
    %cst_42 = arith.constant dense<0.000000e+00> : vector<32x16xf32>
    %76 = tpu.matmul %11, %75, %cst_42 {dimension_numbers = #tpu.dot_dimension_numbers<[1], [0], [0], [1], [0, 0, 1, 1], [], []>} : vector<32x8xbf16>, vector<8x16xbf16>, vector<32x16xf32> -> vector<32x16xf32>
    %c0_43 = arith.constant 0 : index
    %c0_44 = arith.constant 0 : index
    %77 = vector.load %arg10[%c0_43, %c0_44] : memref<1x16xf32, #tpu.memory_space<vmem>>, vector<1x16xf32>
    %78 = vector.broadcast %77 : vector<1x16xf32> to vector<32x16xf32>
    %79 = arith.addf %76, %78 : vector<32x16xf32>
    %80 = arith.addf %74, %79 : vector<32x16xf32>
    %cst_45 = arith.constant 0.000000e+00 : f32
    %81 = vector.broadcast %cst_45 : f32 to vector<32x16xf32>
    %82 = arith.maximumf %80, %81 : vector<32x16xf32>
    %83 = arith.truncf %82 : vector<32x16xf32> to vector<32x16xbf16>
    %84 = vector.shape_cast %83 : vector<32x16xbf16> to vector<2x16x16xbf16>
    %c0_46 = arith.constant 0 : index
    %c0_47 = arith.constant 0 : index
    %c0_48 = arith.constant 0 : index
    %85 = vector.load %arg11[%c0_46, %c0_47, %c0_48] : memref<2x16x16xbf16, #tpu.memory_space<vmem>>, vector<2x16x16xbf16>
    tpu.vector_store %arg11[%c0_46, %c0_47, %c0_48], %84 {strides = array<i32>} : memref<2x16x16xbf16, #tpu.memory_space<vmem>>, vector<2x16x16xbf16>,
    return
  }
  func.func @transform_0(%arg0: i32) -> (i32, i32, i32) {
    %c0_i32 = arith.constant 0 : i32
    %c0_i32_0 = arith.constant 0 : i32
    %c0_i32_1 = arith.constant 0 : i32
    return %arg0, %c0_i32, %c0_i32_0 : i32, i32, i32
  }
  func.func @transform_1(%arg0: i32) -> (i32, i32) {
    %c0_i32 = arith.constant 0 : i32
    %c0_i32_0 = arith.constant 0 : i32
    %c0_i32_1 = arith.constant 0 : i32
    return %c0_i32, %c0_i32_0 : i32, i32
  }
  func.func @transform_2(%arg0: i32) -> (i32, i32) {
    %c0_i32 = arith.constant 0 : i32
    %c0_i32_0 = arith.constant 0 : i32
    %c0_i32_1 = arith.constant 0 : i32
    return %c0_i32, %c0_i32_0 : i32, i32
  }
  func.func @transform_3(%arg0: i32) -> (i32, i32) {
    %c0_i32 = arith.constant 0 : i32
    %c0_i32_0 = arith.constant 0 : i32
    %c0_i32_1 = arith.constant 0 : i32
    return %c0_i32, %c0_i32_0 : i32, i32
  }
  func.func @transform_4(%arg0: i32) -> (i32, i32, i32) {
    %c0_i32 = arith.constant 0 : i32
    %c0_i32_0 = arith.constant 0 : i32
    %c0_i32_1 = arith.constant 0 : i32
    %c0_i32_2 = arith.constant 0 : i32
    return %c0_i32, %c0_i32_0, %c0_i32_1 : i32, i32, i32
  }
  func.func @transform_5(%arg0: i32) -> (i32, i32) {
    %c0_i32 = arith.constant 0 : i32
    %c0_i32_0 = arith.constant 0 : i32
    %c0_i32_1 = arith.constant 0 : i32
    return %c0_i32, %c0_i32_0 : i32, i32
  }
  func.func @transform_6(%arg0: i32) -> (i32, i32) {
    %c0_i32 = arith.constant 0 : i32
    %c0_i32_0 = arith.constant 0 : i32
    %c0_i32_1 = arith.constant 0 : i32
    return %c0_i32, %c0_i32_0 : i32, i32
  }
  func.func @transform_7(%arg0: i32) -> (i32, i32) {
    %c0_i32 = arith.constant 0 : i32
    %c0_i32_0 = arith.constant 0 : i32
    %c0_i32_1 = arith.constant 0 : i32
    return %c0_i32, %c0_i32_0 : i32, i32
  }
  func.func @transform_8(%arg0: i32) -> (i32, i32) {
    %c0_i32 = arith.constant 0 : i32
    %c0_i32_0 = arith.constant 0 : i32
    %c0_i32_1 = arith.constant 0 : i32
    return %c0_i32, %c0_i32_0 : i32, i32
  }
  func.func @transform_9(%arg0: i32) -> (i32, i32) {
    %c0_i32 = arith.constant 0 : i32
    %c0_i32_0 = arith.constant 0 : i32
    %c0_i32_1 = arith.constant 0 : i32
    return %c0_i32, %c0_i32_0 : i32, i32
  }
  func.func @transform_10(%arg0: i32) -> (i32, i32, i32) {
    %c0_i32 = arith.constant 0 : i32
    %c0_i32_0 = arith.constant 0 : i32
    %c0_i32_1 = arith.constant 0 : i32
    return %arg0, %c0_i32, %c0_i32_0 : i32, i32, i32
  }
  func.func @transform_11(%arg0: i32) -> (i32, i32, i32) {
    %c0_i32 = arith.constant 0 : i32
    %c0_i32_0 = arith.constant 0 : i32
    %c0_i32_1 = arith.constant 0 : i32
    return %arg0, %c0_i32, %c0_i32_0 : i32, i32, i32
  }
}

</mosaic_0001>

<llo_original>
// kernel: tpu_custom_call.1
$region0: #{tpu_custom_call.1}
  #allocation0 [shape = 'u32[]', space=smem, size = 0x4, offset = 0x4, fixed_abs, tag = 'smem constant byte address 0x4 - core index']
  #allocation1 [shape = 'u32[72,128]{1,0:T(1,128)}', space=vmem, size = 0x9000, scoped, tag = 'internal scratch']
  %s0 = inlined_call_operand.vmem [shape: bf16[2,16,8], index: 0, kind: input, shape index: {}]
  %s1 = inlined_call_operand.vmem [shape: bf16[8,128], index: 1, kind: input, shape index: {}]
  %s2 = inlined_call_operand.vmem [shape: bf16[8,8], index: 2, kind: input, shape index: {}]
  %s3 = inlined_call_operand.hbm [shape: f32[1,8], index: 3, kind: input, shape index: {}]
  %s4 = inlined_call_operand.vmem [shape: bf16[3,8,8], index: 4, kind: input, shape index: {}]
  %s5 = inlined_call_operand.hbm [shape: f32[1,8], index: 5, kind: input, shape index: {}]
  %s6 = inlined_call_operand.vmem [shape: bf16[8,16], index: 6, kind: input, shape index: {}]
  %s7 = inlined_call_operand.vmem [shape: f32[1,16], index: 7, kind: input, shape index: {}]
  %s8 = inlined_call_operand.vmem [shape: bf16[8,16], index: 8, kind: input, shape index: {}]
  %s9 = inlined_call_operand.vmem [shape: f32[1,16], index: 9, kind: input, shape index: {}]
  %s10 = inlined_call_operand.hbm [shape: bf16[2,16,16], index: 10, kind: output, shape index: {0}]
  %s11 = inlined_call_operand.hbm [shape: f32[1,2,128], index: 11, kind: output, shape index: {1}]
  %12 = xla_tuple %s10, %s11
  %s13 = sld [smem:[#allocation0]]
  $region66: #{tpu_custom_call.1} parent=0
    _
  %s15 = ssub.s32 1, %s13
  %s16 = scalar_select 0, %s15, %s13
  $region1: #{tpu_custom_call.1} parent=0
    #allocation2 [shape = 'u8[512]{0}', space=vmem, size = 0x400, scoped, tag = 'input window, operand 3, single buffered']
    #allocation3 [shape = 's32[1]{0}', space=sflag, size = 0x4, scoped, tag = 'scoped memory for tpu_custom_call.1']
    #allocation4 [shape = 's32[1]{0}', space=sflag, size = 0x4, scoped, tag = 'scoped memory for tpu_custom_call.1']
    #allocation5 [shape = 'u8[512]{0}', space=vmem, size = 0x400, scoped, tag = 'input window, operand 5, single buffered']
    #allocation6 [shape = 's32[1]{0}', space=sflag, size = 0x4, scoped, tag = 'scoped memory for tpu_custom_call.1']
    #allocation7 [shape = 'u8[8192]{0}', space=vmem, size = 0x2000, scoped, tag = 'output window, operand 0, single buffered']
    #allocation8 [shape = 'u8[1024]{0}', space=vmem, size = 0x400, scoped, tag = 'output window, operand 1, single buffered']
    #allocation9 [shape = 's32[1]{0}', space=sflag, size = 0x4, scoped, tag = 'scoped memory for tpu_custom_call.1']
    %17 = vsyncpa [#allocation3], 0
    %18 = vsyncpa [#allocation6], 0
    %19 = vsyncpa [#allocation4], 0
    %20 = vsyncpa [#allocation9], 0
    // Predicated region
    $region2: #{tpu_custom_call.1} parent=1 // pred_check
      _
    $region3: #{tpu_custom_call.1} parent=1 // pred_check_branch
      %22 = sbr.rel (0) target = $region5
    $region4: #{tpu_custom_call.1} parent=1 // pred_region
      _
    $region5: #{tpu_custom_call.1} parent=1 // pred_fallthru
      _
    // Predicated region
    $region6: #{tpu_custom_call.1} parent=1 // pred_check
      _
    $region7: #{tpu_custom_call.1} parent=1 // pred_check_branch
      %24 = sbr.rel (0) target = $region9
    $region8: #{tpu_custom_call.1} parent=1 // pred_region
      _
    $region9: #{tpu_custom_call.1} parent=1 // pred_fallthru
      _
    // Predicated region
    $region10: #{tpu_custom_call.1} parent=1 // pred_check
      _
    $region11: #{tpu_custom_call.1} parent=1 // pred_check_branch
      %26 = sbr.rel (0) target = $region13
    $region12: #{tpu_custom_call.1} parent=1 // pred_region
      _
    $region13: #{tpu_custom_call.1} parent=1 // pred_fallthru
      _
    // Predicated region
    $region14: #{tpu_custom_call.1} parent=1 // pred_check
      _
    $region15: #{tpu_custom_call.1} parent=1 // pred_check_branch
      %28 = sbr.rel (0) target = $region17
    $region16: #{tpu_custom_call.1} parent=1 // pred_region
      %30 = vsyncadd [#allocation3], 0
      %s32 = sshll.u32 %s3, 4
      %s33 = int_to_ptr.hbm [resolvable:$true] %s32
      %s34 = sshll.u32 [#allocation2], 4
      %s35 = int_to_ptr.vmem [resolvable:$true] %s34
      %37 = dma.hbm_to_vmem [thread:$0]  %s33, 16, %s35, [#allocation3]
    $region17: #{tpu_custom_call.1} parent=1 // pred_fallthru
      _
    // Predicated region
    $region18: #{tpu_custom_call.1} parent=1 // pred_check
      _
    $region19: #{tpu_custom_call.1} parent=1 // pred_check_branch
      %39 = sbr.rel (0) target = $region21
    $region20: #{tpu_custom_call.1} parent=1 // pred_region
      _
    $region21: #{tpu_custom_call.1} parent=1 // pred_fallthru
      _
    // Predicated region
    $region22: #{tpu_custom_call.1} parent=1 // pred_check
      _
    $region23: #{tpu_custom_call.1} parent=1 // pred_check_branch
      %41 = sbr.rel (0) target = $region25
    $region24: #{tpu_custom_call.1} parent=1 // pred_region
      %43 = vsyncadd [#allocation6], 0
      %s45 = sshll.u32 %s5, 4
      %s46 = int_to_ptr.hbm [resolvable:$true] %s45
      %s47 = sshll.u32 [#allocation5], 4
      %s48 = int_to_ptr.vmem [resolvable:$true] %s47
      %50 = dma.hbm_to_vmem [thread:$0]  %s46, 16, %s48, [#allocation6]
    $region25: #{tpu_custom_call.1} parent=1 // pred_fallthru
      _
    // Predicated region
    $region26: #{tpu_custom_call.1} parent=1 // pred_check
      _
    $region27: #{tpu_custom_call.1} parent=1 // pred_check_branch
      %52 = sbr.rel (0) target = $region29
    $region28: #{tpu_custom_call.1} parent=1 // pred_region
      _
    $region29: #{tpu_custom_call.1} parent=1 // pred_fallthru
      _
    // Predicated region
    $region30: #{tpu_custom_call.1} parent=1 // pred_check
      _
    $region31: #{tpu_custom_call.1} parent=1 // pred_check_branch
      %54 = sbr.rel (0) target = $region33
    $region32: #{tpu_custom_call.1} parent=1 // pred_region
      _
    $region33: #{tpu_custom_call.1} parent=1 // pred_fallthru
      _
    // Predicated region
    $region34: #{tpu_custom_call.1} parent=1 // pred_check
      _
    $region35: #{tpu_custom_call.1} parent=1 // pred_check_branch
      %56 = sbr.rel (0) target = $region37
    $region36: #{tpu_custom_call.1} parent=1 // pred_region
      _
    $region37: #{tpu_custom_call.1} parent=1 // pred_fallthru
      _
    // Predicated region
    $region38: #{tpu_custom_call.1} parent=1 // pred_check
      _
    $region39: #{tpu_custom_call.1} parent=1 // pred_check_branch
      %58 = sbr.rel (0) target = $region41
    $region40: #{tpu_custom_call.1} parent=1 // pred_region
      _
    $region41: #{tpu_custom_call.1} parent=1 // pred_fallthru
      _
    // Predicated region
    $region42: #{tpu_custom_call.1} parent=1 // pred_check
      _
    $region43: #{tpu_custom_call.1} parent=1 // pred_check_branch
      %60 = sbr.rel (0) target = $region45
    $region44: #{tpu_custom_call.1} parent=1 // pred_region
      %62 = dma.done [#allocation3], 16
    $region45: #{tpu_custom_call.1} parent=1 // pred_fallthru
      _
    // Predicated region
    $region46: #{tpu_custom_call.1} parent=1 // pred_check
      _
    $region47: #{tpu_custom_call.1} parent=1 // pred_check_branch
      %64 = sbr.rel (0) target = $region49
    $region48: #{tpu_custom_call.1} parent=1 // pred_region
      %66 = dma.done [#allocation6], 16
    $region49: #{tpu_custom_call.1} parent=1 // pred_fallthru
      _
    %v68 = vld [vmem:[%s0] sm:$0xf]
    %v69 = vld [vmem:[%s0 + $0x4] sm:$0xf]
    %v70 = vld [vmem:[%s0 + $0x8] sm:$0xf]
    %v71 = vld [vmem:[%s0 + $0xc] sm:$0xf]
    %v72 = vunpack.c.l.bf16 %v68
    %v73 = vunpack.c.l.bf16 %v69
    %v74 = vunpack.c.l.bf16 %v70
    %v75 = vunpack.c.l.bf16 %v71
    %vm76 = vcmask 64512
    %v77 = vsel %vm76, %v72, 0.0
    %v78 = vsel %vm76, %v73, 0.0
    %v79 = vadd.f32 %v77, %v78
    %v80 = vrot.slane %v79, 4
    %v81 = vadd.f32 %v79, %v80
    %v82 = vrot.slane %v81, 2
    %v83 = vadd.f32 %v81, %v82
    %v84 = vrot.slane %v83, 1
    %v85 = vadd.f32 %v83, %v84
    %v86 = vsel %vm76, %v74, 0.0
    %v87 = vsel %vm76, %v75, 0.0
    %v88 = vadd.f32 %v86, %v87
    %v89 = vrot.slane %v88, 4
    %v90 = vadd.f32 %v88, %v89
    %v91 = vrot.slane %v90, 2
    %v92 = vadd.f32 %v90, %v91
    %v93 = vrot.slane %v92, 1
    %v94 = vadd.f32 %v92, %v93
    %v95 = vmul.f32 %v85, 0.0625
    %v96 = vmul.f32 %v94, 0.0625
    %v97 = vpack.c.bf16 %v95, %v95
    %v98 = vpack.c.bf16 %v96, %v96
    %v99 = vld [vmem:[%s1] sm:$0xf]
    %v102 = vunpack.c.l.b16 %v97
    %v103 = vunpack.c.l.b16 %v98
    %vm104 = vcmask 1041409
    %v105 = vsel %vm104, %v103, %v102
    %v106 = vpack.c.b16 %v105, %v105
    %v108 = vsel %vm76, %v106, 0
    %vm110 = vcmask 1043456
    %v112 = vsel %vm110, %v99, 0
    %114 = vmatpush.bf16.msra.mxu0 0
    %115 = vmatpush.bf16.msra.mxu0 0
    %116 = vmatpush.bf16.msra.mxu0 0
    %117 = vmatpush.bf16.msra.mxu0 0
    %118 = vmatpush.bf16.msra.mxu0 0
    %119 = vmatpush.bf16.msra.mxu0 0
    %120 = vmatpush.bf16.msra.mxu0 0
    %121 = vmatpush.bf16.msra.mxu0 %v112
    %122 = vmatmul.bf16.gmra.mxu0 %v108
    %v123 = vpop.f32.mrf.mxu0
    %v124 = vadd.f32 0.0, %v123
    %v125 = vpop.f32.mrf.mxu0
    %126 = vdwg.mxu0
    %127 = vst [vmem:[#allocation8] sm:$0x3] %v124
    %v128 = vld [vmem:[%s2] sm:$0xf]
    %v129 = vld [vmem:[#allocation2] sm:$0x1]
    %v131 = vperm.slane %v129, 0
    %v137 = vunpack.c.l.b16 %v68
    %v138 = vunpack.c.l.b16 %v69
    %v139 = vunpack.c.l.b16 %v70
    %v140 = vunpack.c.l.b16 %v71
    %v141 = vpack.c.b16 %v138, %v137
    %v142 = vpack.c.b16 %v140, %v139
    %v144 = vsel %vm76, %v141, 0
    %v147 = vsel %vm76, %v142, 0
    %v150 = vsel %vm110, %v128, 0
    %152 = vmatpush.bf16.msra.mxu0 0
    %153 = vmatpush.bf16.msra.mxu0 0
    %154 = vmatpush.bf16.msra.mxu0 0
    %155 = vmatpush.bf16.msra.mxu0 0
    %156 = vmatpush.bf16.msra.mxu0 0
    %157 = vmatpush.bf16.msra.mxu0 0
    %158 = vmatpush.bf16.msra.mxu0 0
    %159 = vmatpush.bf16.msra.mxu0 %v150
    %160 = vmatmul.bf16.gmra.mxu0 %v144
    %v161 = vpop.f32.mrf.mxu0
    %v162 = vadd.f32 %v131, %v161
    %v163 = vpop.f32.mrf.mxu0
    %v164 = vadd.f32 %v131, %v163
    %165 = vmatmul.bf16.gmra.mxu0 %v147
    %v166 = vpop.f32.mrf.mxu0
    %v167 = vadd.f32 %v131, %v166
    %v168 = vpop.f32.mrf.mxu0
    %v169 = vadd.f32 %v131, %v168
    %170 = vdwg.mxu0
    %v171 = vmax.f32 %v162, 0.0
    %v172 = vmax.f32 %v164, 0.0
    %v173 = vmax.f32 %v167, 0.0
    %v174 = vmax.f32 %v169, 0.0
    %v175 = vlaneseq
    %v176 = vshrl.u32 %v175, 7
    %v177 = vadd.s32 %v176, 8
    %v178 = vadd.s32 %v176, 16
    %v179 = vadd.s32 %v176, 24
    %vm180 = vcmp.lt.s32.totalorder %v176, 0
    %v181 = vsub.s32 0, %v176
    %v182 = vsel %vm180, %v181, %v176
    %v183 = vshrl.u32 %v182, 4
    %v184 = vand.u32 %v182, 15
    %v185 = vsub.s32 0, %v184
    %v186 = vsel %vm180, %v185, %v184
    %vm187 = vcmp.lt.s32.totalorder %v177, 0
    %v188 = vsub.s32 0, %v177
    %v189 = vsel %vm187, %v188, %v177
    %v190 = vshrl.u32 %v189, 4
    %v191 = vand.u32 %v189, 15
    %v192 = vsub.s32 0, %v191
    %v193 = vsel %vm187, %v192, %v191
    %vm194 = vcmp.lt.s32.totalorder %v178, 0
    %v195 = vsub.s32 0, %v178
    %v196 = vsel %vm194, %v195, %v178
    %v197 = vshrl.u32 %v196, 4
    %v198 = vand.u32 %v196, 15
    %v199 = vsub.s32 0, %v198
    %v200 = vsel %vm194, %v199, %v198
    %vm201 = vcmp.lt.s32.totalorder %v179, 0
    %v202 = vsub.s32 0, %v179
    %v203 = vsel %vm201, %v202, %v179
    %v204 = vshrl.u32 %v203, 4
    %v205 = vand.u32 %v203, 15
    %v206 = vsub.s32 0, %v205
    %v207 = vsel %vm201, %v206, %v205
    %vm208 = vcmp.ne.s32.totalorder %v186, 0
    %vm209 = vcmp.ne.s32.totalorder %v193, 0
    %vm210 = vcmp.ne.s32.totalorder %v200, 0
    %vm211 = vcmp.ne.s32.totalorder %v207, 0
    %vm212 = vcmp.lt.s32.totalorder %v186, 0
    %vm213 = vcmp.lt.s32.totalorder %v193, 0
    %vm214 = vcmp.lt.s32.totalorder %v200, 0
    %vm215 = vcmp.lt.s32.totalorder %v207, 0
    %vm216 = vmand %vm212, %vm208
    %vm217 = vmand %vm213, %vm209
    %vm218 = vmand %vm214, %vm210
    %vm219 = vmand %vm215, %vm211
    %v220 = vadd.s32 %v186, 16
    %v221 = vadd.s32 %v193, 16
    %v222 = vadd.s32 %v200, 16
    %v223 = vadd.s32 %v207, 16
    %v224 = vsel %vm216, %v220, %v186
    %v225 = vsel %vm217, %v221, %v193
    %v226 = vsel %vm218, %v222, %v200
    %v227 = vsel %vm219, %v223, %v207
    %vm228 = vcmp.eq.s32.totalorder %v224, 0
    %vm229 = vcmp.eq.s32.totalorder %v225, 0
    %vm230 = vcmp.eq.s32.totalorder %v226, 0
    %vm231 = vcmp.eq.s32.totalorder %v227, 0
    %v232 = vrot.slane %v171, 7
    %v233 = vrot.slane %v172, 7
    %v234 = vrot.slane %v173, 7
    %v235 = vrot.slane %v174, 7
    %vm236 = vcmp.lt.s32.totalorder %v176, 1
    %v237 = vsel %vm236, %v234, %v235
    %v238 = vsel %vm236, %v233, %v234
    %v239 = vsel %vm236, %v232, %v233
    %v240 = vsel %vm236, %v235, %v232
    %v241 = vsel %vm228, 1, 0
    %v242 = vsel %vm229, 1, 0
    %v243 = vsel %vm230, 1, 0
    %v244 = vsel %vm231, 1, 0
    %vm245 = vcmp.eq.s32.totalorder %v241, 1
    %vm246 = vcmp.eq.s32.totalorder %v242, 1
    %vm247 = vcmp.eq.s32.totalorder %v243, 1
    %vm248 = vcmp.eq.s32.totalorder %v244, 1
    %v249 = vsel %vm245, 0.0, %v240
    %v250 = vsel %vm246, 0.0, %v239
    %v251 = vsel %vm247, 0.0, %v238
    %v252 = vsel %vm248, 0.0, %v237
    %v253 = vpack.c.bf16 %v250, %v249
    %v254 = vpack.c.bf16 %v252, %v251
    %vm255 = vcmp.ge.s32.totalorder %v224, 15
    %vm256 = vcmp.ge.s32.totalorder %v225, 15
    %vm257 = vcmp.ge.s32.totalorder %v226, 15
    %vm258 = vcmp.ge.s32.totalorder %v227, 15
    %v259 = vrot.slane %v171, 1
    %v260 = vrot.slane %v172, 1
    %v261 = vrot.slane %v173, 1
    %v262 = vrot.slane %v174, 1
    %vm263 = vcmp.lt.s32.totalorder %v176, 7
    %v264 = vsel %vm263, %v261, %v262
    %v265 = vsel %vm263, %v260, %v261
    %v266 = vsel %vm263, %v259, %v260
    %v267 = vsel %vm263, %v262, %v259
    %v268 = vsel %vm255, 1, 0
    %v269 = vsel %vm256, 1, 0
    %v270 = vsel %vm257, 1, 0
    %v271 = vsel %vm258, 1, 0
    %vm272 = vcmp.eq.s32.totalorder %v268, 1
    %vm273 = vcmp.eq.s32.totalorder %v269, 1
    %vm274 = vcmp.eq.s32.totalorder %v270, 1
    %vm275 = vcmp.eq.s32.totalorder %v271, 1
    %v276 = vsel %vm272, 0.0, %v266
    %v277 = vsel %vm273, 0.0, %v265
    %v278 = vsel %vm274, 0.0, %v264
    %v279 = vsel %vm275, 0.0, %v267
    %v280 = vpack.c.bf16 %v277, %v276
    %v281 = vpack.c.bf16 %v279, %v278
    %v282 = vpack.c.bf16 %v172, %v171
    %v283 = vpack.c.bf16 %v174, %v173
    %v284 = vld [vmem:[%s4] sm:$0xf]
    %s285 = scalar_lea.vmem %s4, 4
    %v286 = vld [vmem:[%s285] sm:$0xf]
    %v288 = vsel %vm76, %v282, 0
    %v291 = vsel %vm76, %v283, 0
    %v294 = vsel %vm110, %v286, 0
    %296 = vmatpush.bf16.msra.mxu0 0
    %297 = vmatpush.bf16.msra.mxu0 0
    %298 = vmatpush.bf16.msra.mxu0 0
    %299 = vmatpush.bf16.msra.mxu0 0
    %300 = vmatpush.bf16.msra.mxu0 0
    %301 = vmatpush.bf16.msra.mxu0 0
    %302 = vmatpush.bf16.msra.mxu0 0
    %303 = vmatpush.bf16.msra.mxu0 %v294
    %304 = vmatmul.bf16.gmra.mxu0 %v288
    %v305 = vpop.f32.mrf.mxu0
    %v306 = vadd.f32 0.0, %v305
    %v307 = vpop.f32.mrf.mxu0
    %v308 = vadd.f32 0.0, %v307
    %309 = vmatmul.bf16.gmra.mxu0 %v291
    %v310 = vpop.f32.mrf.mxu0
    %v311 = vadd.f32 0.0, %v310
    %v312 = vpop.f32.mrf.mxu0
    %v313 = vadd.f32 0.0, %v312
    %314 = vdwg.mxu0
    %v316 = vsel %vm76, %v253, 0
    %v319 = vsel %vm76, %v254, 0
    %v322 = vsel %vm110, %v284, 0
    %324 = vmatpush.bf16.msra.mxu0 0
    %325 = vmatpush.bf16.msra.mxu0 0
    %326 = vmatpush.bf16.msra.mxu0 0
    %327 = vmatpush.bf16.msra.mxu0 0
    %328 = vmatpush.bf16.msra.mxu0 0
    %329 = vmatpush.bf16.msra.mxu0 0
    %330 = vmatpush.bf16.msra.mxu0 0
    %331 = vmatpush.bf16.msra.mxu0 %v322
    %332 = vmatmul.bf16.gmra.mxu0 %v316
    %v333 = vpop.f32.mrf.mxu0
    %v334 = vadd.f32 %v306, %v333
    %v335 = vpop.f32.mrf.mxu0
    %v336 = vadd.f32 %v308, %v335
    %337 = vmatmul.bf16.gmra.mxu0 %v319
    %v338 = vpop.f32.mrf.mxu0
    %v339 = vadd.f32 %v311, %v338
    %v340 = vpop.f32.mrf.mxu0
    %v341 = vadd.f32 %v313, %v340
    %342 = vdwg.mxu0
    %s343 = scalar_lea.vmem %s4, 8
    %v344 = vld [vmem:[%s343] sm:$0xf]
    %v346 = vsel %vm76, %v280, 0
    %v349 = vsel %vm76, %v281, 0
    %v352 = vsel %vm110, %v344, 0
    %354 = vmatpush.bf16.msra.mxu0 0
    %355 = vmatpush.bf16.msra.mxu0 0
    %356 = vmatpush.bf16.msra.mxu0 0
    %357 = vmatpush.bf16.msra.mxu0 0
    %358 = vmatpush.bf16.msra.mxu0 0
    %359 = vmatpush.bf16.msra.mxu0 0
    %360 = vmatpush.bf16.msra.mxu0 0
    %361 = vmatpush.bf16.msra.mxu0 %v352
    %362 = vmatmul.bf16.gmra.mxu0 %v346
    %v363 = vpop.f32.mrf.mxu0
    %v364 = vadd.f32 0.0, %v363
    %v365 = vpop.f32.mrf.mxu0
    %v366 = vadd.f32 0.0, %v365
    %367 = vmatmul.bf16.gmra.mxu0 %v349
    %v368 = vpop.f32.mrf.mxu0
    %v369 = vadd.f32 0.0, %v368
    %v370 = vpop.f32.mrf.mxu0
    %v371 = vadd.f32 0.0, %v370
    %372 = vdwg.mxu0
    %v373 = vadd.f32 %v334, %v364
    %v374 = vadd.f32 %v336, %v366
    %v375 = vadd.f32 %v339, %v369
    %v376 = vadd.f32 %v341, %v371
    %v377 = vld [vmem:[#allocation5] sm:$0x1]
    %v379 = vperm.slane %v377, 0
    %v381 = vadd.f32 %v373, %v379
    %v382 = vadd.f32 %v374, %v379
    %v383 = vadd.f32 %v375, %v379
    %v384 = vadd.f32 %v376, %v379
    %v385 = vmax.f32 %v381, 0.0
    %v386 = vmax.f32 %v382, 0.0
    %v387 = vmax.f32 %v383, 0.0
    %v388 = vmax.f32 %v384, 0.0
    %v389 = vpack.c.bf16 %v386, %v385
    %v390 = vpack.c.bf16 %v388, %v387
    %v391 = vld [vmem:[%s6] sm:$0xf]
    %v392 = vld [vmem:[%s7] sm:$0x1]
    %v394 = vperm.slane %v392, 0
    %v397 = vsel %vm76, %v389, 0
    %v400 = vsel %vm76, %v390, 0
    %v403 = vsel %vm110, %v391, 0
    %405 = vmatpush.bf16.msra.mxu0 0
    %406 = vmatpush.bf16.msra.mxu0 0
    %407 = vmatpush.bf16.msra.mxu0 0
    %408 = vmatpush.bf16.msra.mxu0 0
    %409 = vmatpush.bf16.msra.mxu0 0
    %410 = vmatpush.bf16.msra.mxu0 0
    %411 = vmatpush.bf16.msra.mxu0 0
    %412 = vmatpush.bf16.msra.mxu0 %v403
    %413 = vmatmul.bf16.gmra.mxu0 %v397
    %v414 = vpop.f32.mrf.mxu0
    %v415 = vadd.f32 %v394, %v414
    %v416 = vpop.f32.mrf.mxu0
    %v417 = vadd.f32 %v394, %v416
    %418 = vmatmul.bf16.gmra.mxu0 %v400
    %v419 = vpop.f32.mrf.mxu0
    %v420 = vadd.f32 %v394, %v419
    %v421 = vpop.f32.mrf.mxu0
    %v422 = vadd.f32 %v394, %v421
    %423 = vdwg.mxu0
    %v424 = vld [vmem:[%s8] sm:$0xf]
    %v425 = vld [vmem:[%s9] sm:$0x1]
    %v427 = vperm.slane %v425, 0
    %v430 = vsel %vm110, %v424, 0
    %432 = vmatpush.bf16.msra.mxu0 0
    %433 = vmatpush.bf16.msra.mxu0 0
    %434 = vmatpush.bf16.msra.mxu0 0
    %435 = vmatpush.bf16.msra.mxu0 0
    %436 = vmatpush.bf16.msra.mxu0 0
    %437 = vmatpush.bf16.msra.mxu0 0
    %438 = vmatpush.bf16.msra.mxu0 0
    %439 = vmatpush.bf16.msra.mxu0 %v430
    %440 = vmatmul.bf16.gmra.mxu0 %v144
    %v441 = vpop.f32.mrf.mxu0
    %v442 = vadd.f32 %v427, %v441
    %v443 = vpop.f32.mrf.mxu0
    %v444 = vadd.f32 %v427, %v443
    %445 = vmatmul.bf16.gmra.mxu0 %v147
    %v446 = vpop.f32.mrf.mxu0
    %v447 = vadd.f32 %v427, %v446
    %v448 = vpop.f32.mrf.mxu0
    %v449 = vadd.f32 %v427, %v448
    %450 = vdwg.mxu0
    %v451 = vadd.f32 %v415, %v442
    %v452 = vadd.f32 %v417, %v444
    %v453 = vadd.f32 %v420, %v447
    %v454 = vadd.f32 %v422, %v449
    %v455 = vmax.f32 %v451, 0.0
    %v456 = vmax.f32 %v452, 0.0
    %v457 = vmax.f32 %v453, 0.0
    %v458 = vmax.f32 %v454, 0.0
    %v459 = vpack.c.bf16 %v455, %v455
    %v460 = vpack.c.bf16 %v456, %v456
    %v461 = vpack.c.bf16 %v457, %v457
    %v462 = vpack.c.bf16 %v458, %v458
    %vm463 = vcmask 125952
    %464 = vst.msk [vmem:[#allocation7] sm:$0xf] %vm463, %v459
    %465 = vst.msk [vmem:[#allocation7 + $0x4] sm:$0xf] %vm463, %v460
    %466 = vst.msk [vmem:[#allocation7 + $0x8] sm:$0xf] %vm463, %v461
    %467 = vst.msk [vmem:[#allocation7 + $0xc] sm:$0xf] %vm463, %v462
    // Predicated region
    $region50: #{tpu_custom_call.1} parent=1 // pred_check
      _
    $region51: #{tpu_custom_call.1} parent=1 // pred_check_branch
      %469 = sbr.rel (0) target = $region53
    $region52: #{tpu_custom_call.1} parent=1 // pred_region
      %471 = vsyncadd [#allocation4], 0
      %s472 = sshll.u32 [#allocation7], 4
      %s473 = int_to_ptr.vmem [resolvable:$true] %s472
      %s474 = sshll.u32 %s10, 4
      %s475 = int_to_ptr.hbm [resolvable:$true] %s474
      %480 = dma.vmem_to_hbm [thread:$0]  %s473, 256, %s475, [#allocation4], 64, 64, 4
    $region53: #{tpu_custom_call.1} parent=1 // pred_fallthru
      _
    // Predicated region
    $region54: #{tpu_custom_call.1} parent=1 // pred_check
      _
    $region55: #{tpu_custom_call.1} parent=1 // pred_check_branch
      %482 = sbr.rel (0) target = $region57
    $region56: #{tpu_custom_call.1} parent=1 // pred_region
      %484 = vsyncadd [#allocation9], 0
      %s486 = sshll.u32 [#allocation8], 4
      %s487 = int_to_ptr.vmem [resolvable:$true] %s486
      %s488 = sshll.u32 %s11, 4
      %s489 = int_to_ptr.hbm [resolvable:$true] %s488
      %491 = dma.vmem_to_hbm [thread:$0]  %s487, 32, %s489, [#allocation9]
    $region57: #{tpu_custom_call.1} parent=1 // pred_fallthru
      _
    // Predicated region
    $region58: #{tpu_custom_call.1} parent=1 // pred_check
      _
    $region59: #{tpu_custom_call.1} parent=1 // pred_check_branch
      %493 = sbr.rel (0) target = $region61
    $region60: #{tpu_custom_call.1} parent=1 // pred_region
      %495 = dma.done [#allocation4], 256
    $region61: #{tpu_custom_call.1} parent=1 // pred_fallthru
      _
    // Predicated region
    $region62: #{tpu_custom_call.1} parent=1 // pred_check
      _
    $region63: #{tpu_custom_call.1} parent=1 // pred_check_branch
      %497 = sbr.rel (0) target = $region65
    $region64: #{tpu_custom_call.1} parent=1 // pred_region
      %499 = dma.done [#allocation9], 32
    $region65: #{tpu_custom_call.1} parent=1 // pred_fallthru
      _
    %500 = vsyncpa [#allocation3], 1
    %501 = vsyncpa [#allocation6], 1
    %502 = vsyncpa [#allocation4], 1
    %503 = vsyncpa [#allocation9], 1

</llo_original>
